<compile_context>
chip_gen: v7x
topology: tpu7x:2x2x1
jax: 0.10.0
libtpu: 0.0.40
codegen_flags: <defaults>
</compile_context>

<pallas_src>
import functools

import jax
import jax.numpy as jnp
from jax.experimental import pallas as pl
from jax.experimental.pallas import tpu as pltpu


_VMEM_LIMIT_BYTES = 48 * 1024 * 1024      # <= v7x's 64 MiB physical VMEM
_VMEM_BUDGET_BYTES = 40 * 1024 * 1024     # leave headroom for compiler scratch


def _round_up(x, m):
    return ((x + m - 1) // m) * m


def _pick_block_rows(n, d, itemsize, budget_bytes=_VMEM_BUDGET_BYTES):
    """Largest row-block TM (multiple of 8) whose working set fits the budget."""
    n8 = _round_up(n, 8)
    candidates = [n8] + [t for t in (512, 256, 128, 64, 32, 16, 8) if t < n8]
    for tm in candidates:
        n_pad = _round_up(n, tm)
        resident = 2 * n_pad * d * itemsize     # VMEM-resident full reps
        row_blk = 2 * tm * d * itemsize         # double-buffered row block
        slab = 6 * tm * n_pad * 4               # f32/i32 (TM, N) temporaries
        if resident + row_blk + slab <= budget_bytes:
            return tm
    # TODO(synk): add flash-style column tiling (online logsumexp over column
    # blocks) for N large enough that even an 8-row slab + resident reps
    # overflows VMEM.
    return 8


def _ntxent_kernel(row_ref, reps_ref, out_ref, *, batch_size, n_valid, temperature):
    # row_ref : (TM, D)     pipelined row block of the (normalized) reps
    # reps_ref: (N_pad, D)  full (normalized) reps, resident in VMEM
    # out_ref : (TM, 1)     per-row (lse - pos); padded rows written as 0
    tm = row_ref.shape[0]
    n_pad = reps_ref.shape[0]
    row0 = pl.program_id(0) * tm

    # (TM, N_pad) similarity slab straight off the MXU: contract the last dim
    # of BOTH operands (no explicit transpose of the resident reps).
    sim = jax.lax.dot_general(
        row_ref[...], reps_ref[...],
        dimension_numbers=(((1,), (1,)), ((), ())),
        preferred_element_type=jnp.float32)
    logits = sim * jnp.float32(1.0 / temperature)

    gr = row0 + jax.lax.broadcasted_iota(jnp.int32, (tm, n_pad), 0)   # global row id
    gc = jax.lax.broadcasted_iota(jnp.int32, (tm, n_pad), 1)          # global col id

    # Positive logit: the paired sample sits at column (r + B) mod N.
    pos_col = jnp.where(gr < batch_size, gr + batch_size, gr - batch_size)
    pos = jnp.sum(jnp.where(gc == pos_col, logits, 0.0), axis=-1, keepdims=True)

    # CrossEntropy(label=0) over [positive, negatives] == logsumexp over the
    # full row minus the diagonal entry; padded columns are masked out too.
    masked = jnp.where((gc == gr) | (gc >= n_valid), -jnp.inf, logits)
    m = jnp.max(masked, axis=-1, keepdims=True)
    lse = m + jnp.log(jnp.sum(jnp.exp(masked - m), axis=-1, keepdims=True))

    row_valid = (row0 + jax.lax.broadcasted_iota(jnp.int32, (tm, 1), 0)) < n_valid
    out_ref[...] = jnp.where(row_valid, lse - pos, 0.0)


def ntxent_loss(zis, zjs, *, temperature=0.2, use_cosine_similarity=True,
                matmul_dtype=jnp.float32, block_rows=None):
    """zis, zjs: (B, 1, D) feature tensors.  Returns scalar float32 loss."""
    B = zis.shape[0]
    D = zis.shape[-1]
    N = 2 * B

    reps = jnp.concatenate([zjs.reshape(B, D), zis.reshape(B, D)], axis=0)
    reps = reps.astype(jnp.float32)
    if use_cosine_similarity:
        # Pre-normalize rows once (O(N*D)) so the kernel's matmul directly
        # yields cosine similarity.  Per-row clamp at sqrt(1e-8) matches
        # torch's max(||a||*||b||, 1e-8) for all non-degenerate rows.
        norm = jnp.sqrt(jnp.sum(reps * reps, axis=-1, keepdims=True))
        reps = reps / jnp.maximum(norm, 1e-4)
    reps = reps.astype(matmul_dtype)   # bf16 feed => ~2x MXU on v6e/v7x; acc stays f32

    itemsize = jnp.dtype(matmul_dtype).itemsize
    tm = block_rows if block_rows is not None else _pick_block_rows(N, D, itemsize)
    n_pad = _round_up(N, tm)
    if n_pad != N:
        reps = jnp.pad(reps, ((0, n_pad - N), (0, 0)))
    num_blocks = n_pad // tm

    kernel = functools.partial(
        _ntxent_kernel, batch_size=B, n_valid=N, temperature=temperature)

    per_row = pl.pallas_call(
        kernel,
        out_shape=jax.ShapeDtypeStruct((n_pad, 1), jnp.float32),
        grid_spec=pltpu.PrefetchScalarGridSpec(
            num_scalar_prefetch=0,
            grid=(num_blocks,),
            in_specs=[
                pl.BlockSpec((tm, D), lambda i: (i, 0)),       # pipelined row block
                pl.BlockSpec((n_pad, D), lambda i: (0, 0)),    # resident full reps
            ],
            out_specs=pl.BlockSpec((tm, 1), lambda i: (i, 0)),
        ),
        compiler_params=pltpu.CompilerParams(
            dimension_semantics=("parallel",),
            vmem_limit_bytes=_VMEM_LIMIT_BYTES,
        ),
    )(reps, reps)

    return jnp.sum(per_row) / N


def _ntxent_reference(zis, zjs, *, temperature=0.2, use_cosine_similarity=True):
    # pure-JAX reference mirroring the PyTorch semantics
    B = zis.shape[0]
    D = zis.shape[-1]
    reps = jnp.concatenate([zjs.reshape(B, D), zis.reshape(B, D)], axis=0).astype(jnp.float32)
    N = 2 * B
    sim = reps @ reps.T
    if use_cosine_similarity:
        norm = jnp.sqrt(jnp.sum(reps * reps, axis=-1, keepdims=True))
        sim = sim / jnp.maximum(norm * norm.T, 1e-8)
    logits = sim / temperature
    idx = jnp.arange(N)
    pos = logits[idx, (idx + B) % N]
    masked = jnp.where(jnp.eye(N, dtype=bool), -jnp.inf, logits)
    lse = jax.scipy.special.logsumexp(masked, axis=-1)
    return jnp.sum(lse - pos) / N


if __name__ == "__main__":
    key = jax.random.PRNGKey(0)
    k1, k2, k3, k4 = jax.random.split(key, 4)

    B, D = 8, 32
    zis = jax.random.normal(k1, (B, 1, D), dtype=jnp.float32)
    zjs = jax.random.normal(k2, (B, 1, D), dtype=jnp.float32)

    # 1) cosine similarity, f32 MXU feed, auto tile size
    loss = jax.block_until_ready(ntxent_loss(zis, zjs))
    ref = _ntxent_reference(zis, zjs)
    assert jnp.allclose(loss, ref, rtol=1e-4, atol=1e-4), (loss, ref)

    # 2) multi-block grid (two 8-row blocks) — exercises the parallel row axis
    loss_blk = jax.block_until_ready(ntxent_loss(zis, zjs, block_rows=8))
    assert jnp.allclose(loss_blk, ref, rtol=1e-4, atol=1e-4), (loss_blk, ref)

    # 3) row-padding path (N = 10 padded to 16, padded rows masked out)
    zis5 = jax.random.normal(k3, (5, 1, D), dtype=jnp.float32)
    zjs5 = jax.random.normal(k4, (5, 1, D), dtype=jnp.float32)
    loss5 = jax.block_until_ready(ntxent_loss(zis5, zjs5))
    ref5 = _ntxent_reference(zis5, zjs5)
    assert jnp.allclose(loss5, ref5, rtol=1e-4, atol=1e-4), (loss5, ref5)

    # 4) dot-product similarity branch
    loss_dot = jax.block_until_ready(ntxent_loss(zis, zjs, use_cosine_similarity=False))
    ref_dot = _ntxent_reference(zis, zjs, use_cosine_similarity=False)
    assert jnp.allclose(loss_dot, ref_dot, rtol=1e-4, atol=1e-4), (loss_dot, ref_dot)

    # 5) bf16 MXU feed (v6e/v7x fast path); looser tolerance for bf16 rounding
    loss_bf16 = jax.block_until_ready(ntxent_loss(zis, zjs, matmul_dtype=jnp.bfloat16))
    assert jnp.allclose(loss_bf16, ref, rtol=5e-2, atol=5e-2), (loss_bf16, ref)

    print("KERNEL_OK")
</pallas_src>

<mosaic_0001>
module attributes {stable_mosaic.version = 11 : i64} {
  func.func @_ntxent_kernel(%arg0: i32, %arg1: memref<16x32xf32, #tpu.memory_space<vmem>>, %arg2: memref<16x32xf32, #tpu.memory_space<vmem>>, %arg3: memref<16x1xf32, #tpu.memory_space<vmem>>) attributes {dimension_semantics = [#tpu.dimension_semantics<parallel>], iteration_bounds = array<i64: 1>, scalar_prefetch = 0 : i64, scratch_operands = 0 : i64, tpu.core_type = #tpu.core_type<tc>, window_params = [{transform_indices = @transform_0, window_bounds = array<i64: 16, 32>}, {pipeline_mode = #tpu.pipeline_mode<synchronous>, transform_indices = @transform_1, window_bounds = array<i64: 16, 32>}, {transform_indices = @transform_2, window_bounds = array<i64: 16, 1>}]} {
    %c16_i32 = arith.constant 16 : i32
    %0 = arith.muli %arg0, %c16_i32 : i32
    %c0 = arith.constant 0 : index
    %c0_0 = arith.constant 0 : index
    %1 = vector.load %arg1[%c0, %c0_0] : memref<16x32xf32, #tpu.memory_space<vmem>>, vector<16x32xf32>
    %c0_1 = arith.constant 0 : index
    %c0_2 = arith.constant 0 : index
    %2 = vector.load %arg2[%c0_1, %c0_2] : memref<16x32xf32, #tpu.memory_space<vmem>>, vector<16x32xf32>
    %cst = arith.constant dense<0.000000e+00> : vector<16x16xf32>
    %3 = tpu.matmul %1, %2, %cst {dimension_numbers = #tpu.dot_dimension_numbers<[1], [1], [0], [0], [0, 0, 1, 0], [], []>} : vector<16x32xf32>, vector<16x32xf32>, vector<16x16xf32> -> vector<16x16xf32>
    %cst_3 = arith.constant 5.000000e+00 : f32
    %4 = vector.broadcast %cst_3 : f32 to vector<16x16xf32>
    %5 = arith.mulf %3, %4 : vector<16x16xf32>
    %6 = tpu.iota {dimensions = array<i32: 0>} : vector<16x16xi32>
    %7 = vector.broadcast %0 : i32 to vector<16x16xi32>
    %8 = arith.addi %7, %6 : vector<16x16xi32>
    %9 = tpu.iota {dimensions = array<i32: 1>} : vector<16x16xi32>
    %c8_i32 = arith.constant 8 : i32
    %10 = vector.broadcast %c8_i32 : i32 to vector<16x16xi32>
    %11 = arith.cmpi slt, %8, %10 : vector<16x16xi32>
    %c8_i32_4 = arith.constant 8 : i32
    %12 = vector.broadcast %c8_i32_4 : i32 to vector<16x16xi32>
    %13 = arith.addi %8, %12 : vector<16x16xi32>
    %c8_i32_5 = arith.constant 8 : i32
    %14 = vector.broadcast %c8_i32_5 : i32 to vector<16x16xi32>
    %15 = arith.subi %8, %14 : vector<16x16xi32>
    %16 = arith.select %11, %13, %15 : vector<16x16xi1>, vector<16x16xi32>
    %17 = arith.cmpi eq, %9, %16 : vector<16x16xi32>
    %cst_6 = arith.constant 0.000000e+00 : f32
    %18 = vector.broadcast %cst_6 : f32 to vector<16x16xf32>
    %19 = arith.select %17, %5, %18 : vector<16x16xi1>, vector<16x16xf32>
    %cst_7 = arith.constant dense<0.000000e+00> : vector<16xf32>
    %20 = vector.multi_reduction <add>, %19, %cst_7 [1] : vector<16x16xf32> to vector<16xf32>
    %21 = vector.shape_cast %20 : vector<16xf32> to vector<16x1xf32>
    %22 = arith.cmpi eq, %9, %8 : vector<16x16xi32>
    %c16_i32_8 = arith.constant 16 : i32
    %23 = vector.broadcast %c16_i32_8 : i32 to vector<16x16xi32>
    %24 = arith.cmpi sge, %9, %23 : vector<16x16xi32>
    %25 = arith.ori %22, %24 : vector<16x16xi1>
    %cst_9 = arith.constant 0xFF800000 : f32
    %26 = vector.broadcast %cst_9 : f32 to vector<16x16xf32>
    %27 = arith.select %25, %26, %5 : vector<16x16xi1>, vector<16x16xf32>
    %cst_10 = arith.constant dense<0xFF800000> : vector<16xf32>
    %28 = vector.multi_reduction <maximumf>, %27, %cst_10 [1] : vector<16x16xf32> to vector<16xf32>
    %29 = vector.shape_cast %28 : vector<16xf32> to vector<16x1xf32>
    %30 = vector.broadcast %29 : vector<16x1xf32> to vector<16x16xf32>
    %31 = arith.subf %27, %30 : vector<16x16xf32>
    %32 = math.exp %31 : vector<16x16xf32>
    %cst_11 = arith.constant dense<0.000000e+00> : vector<16xf32>
    %33 = vector.multi_reduction <add>, %32, %cst_11 [1] : vector<16x16xf32> to vector<16xf32>
    %34 = vector.shape_cast %33 : vector<16xf32> to vector<16x1xf32>
    %35 = math.log %34 : vector<16x1xf32>
    %36 = arith.addf %29, %35 : vector<16x1xf32>
    %37 = tpu.iota {dimensions = array<i32: 0>} : vector<16x1xi32>
    %38 = vector.broadcast %0 : i32 to vector<16x1xi32>
    %39 = arith.addi %38, %37 : vector<16x1xi32>
    %c16_i32_12 = arith.constant 16 : i32
    %40 = vector.broadcast %c16_i32_12 : i32 to vector<16x1xi32>
    %41 = arith.cmpi slt, %39, %40 : vector<16x1xi32>
    %42 = arith.subf %36, %21 : vector<16x1xf32>
    %cst_13 = arith.constant 0.000000e+00 : f32
    %43 = vector.broadcast %cst_13 : f32 to vector<16x1xf32>
    %44 = arith.select %41, %42, %43 : vector<16x1xi1>, vector<16x1xf32>
    %c0_14 = arith.constant 0 : index
    %c0_15 = arith.constant 0 : index
    %45 = vector.load %arg3[%c0_14, %c0_15] : memref<16x1xf32, #tpu.memory_space<vmem>>, vector<16x1xf32>
    tpu.vector_store %arg3[%c0_14, %c0_15], %44 {strides = array<i32>} : memref<16x1xf32, #tpu.memory_space<vmem>>, vector<16x1xf32>,
    return
  }
  func.func @transform_0(%arg0: i32) -> (i32, i32) {
    %c0_i32 = arith.constant 0 : i32
    %c0_i32_0 = arith.constant 0 : i32
    return %arg0, %c0_i32 : i32, i32
  }
  func.func @transform_1(%arg0: i32) -> (i32, i32) {
    %c0_i32 = arith.constant 0 : i32
    %c0_i32_0 = arith.constant 0 : i32
    %c0_i32_1 = arith.constant 0 : i32
    return %c0_i32, %c0_i32_0 : i32, i32
  }
  func.func @transform_2(%arg0: i32) -> (i32, i32) {
    %c0_i32 = arith.constant 0 : i32
    %c0_i32_0 = arith.constant 0 : i32
    return %arg0, %c0_i32 : i32, i32
  }
}

</mosaic_0001>

<llo_original>
// kernel: tpu_custom_call.1
$region0: #{tpu_custom_call.1}
  #allocation0 [shape = 'u32[]', space=smem, size = 0x4, offset = 0x4, fixed_abs, tag = 'smem constant byte address 0x4 - core index']
  #allocation1 [shape = 'u32[144,128]{1,0:T(1,128)}', space=vmem, size = 0x12000, scoped, tag = 'internal scratch']
  %s0 = inlined_call_operand.hbm [shape: f32[16,32], index: 0, kind: input, shape index: {}]
  %s1 = inlined_call_operand.hbm [shape: f32[16,32], index: 1, kind: input, shape index: {}]
  %s2 = inlined_call_operand.vmem [shape: f32[16,1], index: 2, kind: output, shape index: {}]
  %s3 = sld [smem:[#allocation0]]
  $region26: #{tpu_custom_call.1} parent=0
    _
  %s5 = ssub.s32 1, %s3
  %s6 = scalar_select 0, %s5, %s3
  $region1: #{tpu_custom_call.1} parent=0
    #allocation2 [shape = 'u8[8192]{0}', space=vmem, size = 0x2000, scoped, tag = 'input window, operand 0, single buffered']
    #allocation3 [shape = 's32[1]{0}', space=sflag, size = 0x4, scoped, tag = 'scoped memory for tpu_custom_call.1']
    #allocation4 [shape = 'u8[8192]{0}', space=vmem, size = 0x2000, scoped, tag = 'input window, operand 1, single buffered']
    #allocation5 [shape = 's32[1]{0}', space=sflag, size = 0x4, scoped, tag = 'scoped memory for tpu_custom_call.1']
    %7 = vsyncpa [#allocation3], 0
    %8 = vsyncpa [#allocation5], 0
    // Predicated region
    $region2: #{tpu_custom_call.1} parent=1 // pred_check
      _
    $region3: #{tpu_custom_call.1} parent=1 // pred_check_branch
      %10 = sbr.rel (0) target = $region5
    $region4: #{tpu_custom_call.1} parent=1 // pred_region
      %s12 = ssub.s32 256, 256
      %13 = vsyncadd [#allocation3], %s12
      %s14 = sshll.u32 [#allocation2], 4
      %s15 = int_to_ptr.vmem [resolvable:$true] %s14
      %20 = dma.hbm_to_vmem [thread:$0]  %s0, 256, %s15, [#allocation3], 128, 128, 8
    $region5: #{tpu_custom_call.1} parent=1 // pred_fallthru
      _
    // Predicated region
    $region6: #{tpu_custom_call.1} parent=1 // pred_check
      _
    $region7: #{tpu_custom_call.1} parent=1 // pred_check_branch
      %22 = sbr.rel (0) target = $region9
    $region8: #{tpu_custom_call.1} parent=1 // pred_region
      %s24 = ssub.s32 256, 256
      %25 = vsyncadd [#allocation5], %s24
      %s26 = sshll.u32 [#allocation4], 4
      %s27 = int_to_ptr.vmem [resolvable:$true] %s26
      %32 = dma.hbm_to_vmem [thread:$0]  %s1, 256, %s27, [#allocation5], 128, 128, 8
    $region9: #{tpu_custom_call.1} parent=1 // pred_fallthru
      _
    // Predicated region
    $region10: #{tpu_custom_call.1} parent=1 // pred_check
      _
    $region11: #{tpu_custom_call.1} parent=1 // pred_check_branch
      %34 = sbr.rel (0) target = $region13
    $region12: #{tpu_custom_call.1} parent=1 // pred_region
      %35 = dma.done [#allocation3], 256
    $region13: #{tpu_custom_call.1} parent=1 // pred_fallthru
      _
    // Predicated region
    $region14: #{tpu_custom_call.1} parent=1 // pred_check
      _
    $region15: #{tpu_custom_call.1} parent=1 // pred_check_branch
      %37 = sbr.rel (0) target = $region17
    $region16: #{tpu_custom_call.1} parent=1 // pred_region
      %38 = dma.done [#allocation5], 256
    $region17: #{tpu_custom_call.1} parent=1 // pred_fallthru
      _
    %s39 = smul.u32 0, 16
    %v40 = vld [vmem:[#allocation2] sm:$0xff]
    %v41 = vld [vmem:[#allocation2 + $0x8] sm:$0xff]
    %v42 = vld [vmem:[#allocation4] sm:$0xff]
    %v43 = vld [vmem:[#allocation4 + $0x8] sm:$0xff]
    %vm44 = vcmask 261120
    %v46 = vsel %vm44, %v40, 0
    %v49 = vsel %vm44, %v41, 0
    %v52 = vsel %vm44, %v42, 0
    %v55 = vsel %vm44, %v43, 0
    %57 = vmatprep.subr.mxu0 0.0
    %58 = vmatpush1.xpose.msra.mxu0 %v52
    %59 = vmatprep.subr.mxu0 0.0
    %60 = vmatpush1.xpose.msra.mxu0 %v55
    %61 = vmatprep.subr.mxu0 0.0
    %62 = vmatpush1.xpose.msra.mxu0 0.0
    %63 = vmatprep.subr.mxu0 0.0
    %64 = vmatpush1.xpose.msra.mxu0 0.0
    %65 = vmatprep.subr.mxu0 0.0
    %66 = vmatpush1.xpose.msra.mxu0 0.0
    %67 = vmatprep.subr.mxu0 0.0
    %68 = vmatpush1.xpose.msra.mxu0 0.0
    %69 = vmatprep.subr.mxu0 0.0
    %70 = vmatpush1.xpose.msra.mxu0 0.0
    %71 = vmatprep.subr.mxu0 0.0
    %72 = vmatpush1.xpose.msra.mxu0 0.0
    %73 = vmatprep.subr.mxu0 0.0
    %74 = vmatpush1.xpose.msra.mxu0 0.0
    %75 = vmatprep.subr.mxu0 0.0
    %76 = vmatpush1.xpose.msra.mxu0 0.0
    %77 = vmatprep.subr.mxu0 0.0
    %78 = vmatpush1.xpose.msra.mxu0 0.0
    %79 = vmatprep.subr.mxu0 0.0
    %80 = vmatpush1.xpose.msra.mxu0 0.0
    %81 = vmatprep.subr.mxu0 0.0
    %82 = vmatpush1.xpose.msra.mxu0 0.0
    %83 = vmatprep.subr.mxu0 0.0
    %84 = vmatpush1.xpose.msra.mxu0 0.0
    %85 = vmatprep.subr.mxu0 0.0
    %86 = vmatpush1.xpose.msra.mxu0 0.0
    %87 = vmatprep.subr.mxu0 0.0
    %88 = vmatpush1.xpose.msra.mxu0 0.0
    %89 = vmatprep.subr.mxu0 0.0
    %90 = vmatpush1.xpose.msra.mxu0 0.0
    %91 = vmatprep.subr.mxu0 0.0
    %92 = vmatpush1.xpose.msra.mxu0 0.0
    %93 = vmatprep.subr.mxu0 0.0
    %94 = vmatpush1.xpose.msra.mxu0 0.0
    %95 = vmatprep.subr.mxu0 0.0
    %96 = vmatpush1.xpose.msra.mxu0 0.0
    %97 = vmatprep.subr.mxu0 0.0
    %98 = vmatpush1.xpose.msra.mxu0 0.0
    %99 = vmatprep.subr.mxu0 0.0
    %100 = vmatpush1.xpose.msra.mxu0 0.0
    %101 = vmatprep.subr.mxu0 0.0
    %102 = vmatpush1.xpose.msra.mxu0 0.0
    %103 = vmatprep.subr.mxu0 0.0
    %104 = vmatpush1.xpose.msra.mxu0 0.0
    %105 = vmatprep.subr.mxu0 0.0
    %106 = vmatpush1.xpose.msra.mxu0 0.0
    %107 = vmatprep.subr.mxu0 0.0
    %108 = vmatpush1.xpose.msra.mxu0 0.0
    %109 = vmatprep.subr.mxu0 0.0
    %110 = vmatpush1.xpose.msra.mxu0 0.0
    %111 = vmatprep.subr.mxu0 0.0
    %112 = vmatpush1.xpose.msra.mxu0 0.0
    %113 = vmatprep.subr.mxu0 0.0
    %114 = vmatpush1.xpose.msra.mxu0 0.0
    %115 = vmatprep.subr.mxu0 0.0
    %116 = vmatpush1.xpose.msra.mxu0 0.0
    %117 = vmatprep.subr.mxu0 0.0
    %118 = vmatpush1.xpose.msra.mxu0 0.0
    %119 = vmatprep.subr.mxu0 0.0
    %120 = vmatpush1.xpose.msra.mxu0 0.0
    %121 = vmatprep.mubr.f32.mxu0 0.0
    %122 = vmatmul.mubr.f32.gmra.mrb[0].mxu0 %v46
    %v123 = vpop.f32.mrb[0].mxu0
    %v124 = vadd.f32 0.0, %v123
    %v125 = vpop.f32.mrb[0].mxu0
    %126 = vmatprep.mubr.f32.mxu0 0.0
    %127 = vmatmul.mubr.f32.gmra.mrb[0].mxu0 %v49
    %v128 = vpop.f32.mrb[0].mxu0
    %v129 = vadd.f32 0.0, %v128
    %v130 = vpop.f32.mrb[0].mxu0
    %131 = vdwg.mxu0
    %v132 = vmul.f32 %v124, 5.0
    %v133 = vmul.f32 %v129, 5.0
    %v134 = vlaneseq
    %v135 = vshrl.u32 %v134, 7
    %v136 = vadd.s32 %v135, 8
    %v137 = vstv %s39
    %v138 = vadd.s32 %v137, %v135
    %v139 = vadd.s32 %v137, %v136
    %v140 = vlaneseq
    %v141 = vand.u32 %v140, 127
    %vm142 = vcmp.lt.s32.totalorder %v138, 8
    %vm143 = vcmp.lt.s32.totalorder %v139, 8
    %v144 = vadd.s32 %v138, 8
    %v145 = vadd.s32 %v139, 8
    %v146 = vsub.s32 %v138, 8
    %v147 = vsub.s32 %v139, 8
    %v148 = vsel %vm142, %v144, %v146
    %v149 = vsel %vm143, %v145, %v147
    %vm150 = vcmp.eq.s32.totalorder %v141, %v148
    %vm151 = vcmp.eq.s32.totalorder %v141, %v149
    %v152 = vsel %vm150, %v132, 0.0
    %v153 = vsel %vm151, %v133, 0.0
    %vm154 = vcmask 130048
    %v155 = vsel %vm154, %v152, 0.0
    %156 = vadd.xlane.f32.xlu0 %v155
    %v157 = vpop.xlane.xlu0 %156
    %v158 = vsel %vm154, %v153, 0.0
    %159 = vadd.xlane.f32.xlu0 %v158
    %v160 = vpop.xlane.xlu0 %159
    %vm161 = vcmp.eq.s32.totalorder %v141, %v138
    %vm162 = vcmp.eq.s32.totalorder %v141, %v139
    %vm163 = vcmp.ge.s32.totalorder %v141, 16
    %vm164 = vmor %vm161, %vm163
    %vm165 = vmor %vm162, %vm163
    %v166 = vsel %vm164, -inf, %v132
    %v167 = vsel %vm165, -inf, %v133
    %v168 = vsel %vm154, %v166, -inf
    %169 = vmax.xlane.f32.xlu0 %v168
    %v170 = vpop.xlane.xlu0 %169
    %v171 = vsel %vm154, %v167, -inf
    %172 = vmax.xlane.f32.xlu0 %v171
    %v173 = vpop.xlane.xlu0 %172
    %v174 = vsub.f32 %v166, %v170
    %v175 = vsub.f32 %v167, %v173
    %v176 = vmul.f32 %v174, 1.442695
    %v177 = vpow.pop %v176
    %v178 = vmul.f32 %v175, 1.442695
    %v179 = vpow.pop %v178
    %v180 = vsel %vm154, %v177, 0.0
    %181 = vadd.xlane.f32.xlu0 %v180
    %v182 = vpop.xlane.xlu0 %181
    %v183 = vsel %vm154, %v179, 0.0
    %184 = vadd.xlane.f32.xlu0 %v183
    %v185 = vpop.xlane.xlu0 %184
    %v186 = vlog2.pop %v182
    %v187 = vmul.f32 %v186, 0.6931472
    %v188 = vlog2.pop %v185
    %v189 = vmul.f32 %v188, 0.6931472
    %v190 = vadd.f32 %v170, %v187
    %v191 = vadd.f32 %v173, %v189
    %vm192 = vcmp.lt.s32.totalorder %v138, 16
    %vm193 = vcmp.lt.s32.totalorder %v139, 16
    %v194 = vsub.f32 %v190, %v157
    %v195 = vsub.f32 %v191, %v160
    %v196 = vsel %vm192, %v194, 0.0
    %v197 = vsel %vm193, %v195, 0.0
    %vm198 = vcmask 7168
    %199 = vst.msk [vmem:[%s2] sm:$0xff] %vm198, %v196
    %200 = vst.msk [vmem:[%s2 + $0x8] sm:$0xff] %vm198, %v197
    // Predicated region
    $region18: #{tpu_custom_call.1} parent=1 // pred_check
      _
    $region19: #{tpu_custom_call.1} parent=1 // pred_check_branch
      %202 = sbr.rel (0) target = $region21
    $region20: #{tpu_custom_call.1} parent=1 // pred_region
      _
    $region21: #{tpu_custom_call.1} parent=1 // pred_fallthru
      _
    // Predicated region
    $region22: #{tpu_custom_call.1} parent=1 // pred_check
      _
    $region23: #{tpu_custom_call.1} parent=1 // pred_check_branch
      %204 = sbr.rel (0) target = $region25
    $region24: #{tpu_custom_call.1} parent=1 // pred_region
      _
    $region25: #{tpu_custom_call.1} parent=1 // pred_fallthru
      _
    %205 = vsyncpa [#allocation3], 1
    %206 = vsyncpa [#allocation5], 1

</llo_original>
